<compile_context>
chip_gen: v7x
topology: tpu7x:2x2x1
jax: 0.10.0
libtpu: 0.0.40
codegen_flags: <defaults>
</compile_context>

<pallas_src>
import math

import jax
import jax.numpy as jnp
from jax.experimental import pallas as pl
from jax.experimental.pallas import tpu as pltpu

_LANE = 128
_SUBLANE = 8
# Conservative scoped-VMEM ceiling that fits all of v5e / v6e / v7x.
_VMEM_LIMIT_BYTES = 32 * 1024 * 1024
# Tile budget: leave headroom under the scoped limit for weights, the h
# intermediate and compiler scratch.
_TILE_VMEM_BUDGET = 20 * 1024 * 1024


def _round_up(x, m):
    return ((x + m - 1) // m) * m


def _round_down_at_least(x, m):
    return max(m, (x // m) * m)


def _dnn_kernel(x_ref, w1_ref, b1_ref, w2_ref, b2_ref, out_ref):
    # Layer 1: Linear + ReLU.  bf16 operands, f32 accumulation on the MXU.
    h = jnp.dot(x_ref[...], w1_ref[...], preferred_element_type=jnp.float32)
    h = jnp.maximum(h + b1_ref[...], 0.0)
    # Layer 2: cast h back to the weight dtype so the MXU stays in bf16 mode.
    y = jnp.dot(h.astype(w2_ref.dtype), w2_ref[...],
                preferred_element_type=jnp.float32)
    y = jnp.maximum(y + b2_ref[...], 0.0)
    out_ref[...] = y.astype(out_ref.dtype)


def dnn_forward(x, w1, b1, w2, b2, *, tile_b=None, compute_dtype=jnp.bfloat16):
    """Fused 2-layer MLP forward. x: [B, D_in] -> [B, H2].

    Note: for tiny serving batches (B ~ 8-128) prefer plain XLA (let the MLP
    fuse into the surrounding DeepFM graph); the pallas_call boundary overhead
    dominates there.  This kernel targets large-batch training / inference.
    """
    B, D_in = x.shape
    H1 = w1.shape[1]
    H2 = w2.shape[1]
    out_dtype = x.dtype

    # ---- lane-dense padding of the hidden / output widths -----------------
    H1p = _round_up(H1, _LANE)
    H2p = _round_up(H2, _LANE)

    w1p = jnp.zeros((D_in, H1p), compute_dtype).at[:, :H1].set(
        w1.astype(compute_dtype))
    b1p = jnp.zeros((1, H1p), compute_dtype).at[:, :H1].set(
        b1.reshape(1, H1).astype(compute_dtype))
    w2p = jnp.zeros((H1p, H2p), compute_dtype).at[:H1, :H2].set(
        w2.astype(compute_dtype))
    b2p = jnp.zeros((1, H2p), compute_dtype).at[:, :H2].set(
        b2.reshape(1, H2).astype(compute_dtype))
    xc = x.astype(compute_dtype)

    # ---- batch tile selection ---------------------------------------------
    # Per-row VMEM cost: 2 double-buffered x rows + 2 double-buffered output
    # rows + one f32 row of the h intermediate.
    x_bytes = jnp.dtype(compute_dtype).itemsize
    o_bytes = jnp.dtype(out_dtype).itemsize
    per_row = 2 * D_in * x_bytes + 2 * H2p * o_bytes + H1p * 4
    budget_rows = max(_SUBLANE, _TILE_VMEM_BUDGET // per_row)

    if tile_b is None:
        tile_b = 1024                      # sweep-friendly default
    tile_b = min(int(tile_b), int(budget_rows), B)
    if B >= 2 * _SUBLANE:
        # Keep >= 2 grid steps: enables software pipelining and v7x dual-TC
        # sharding of the parallel batch axis.
        tile_b = min(tile_b, B // 2)
    tile_b = _round_down_at_least(tile_b, _SUBLANE)   # sublane-aligned

    grid = (pl.cdiv(B, tile_b),)

    out_padded = pl.pallas_call(
        _dnn_kernel,
        out_shape=jax.ShapeDtypeStruct((B, H2p), out_dtype),
        grid_spec=pltpu.PrefetchScalarGridSpec(
            num_scalar_prefetch=0,
            grid=grid,
            in_specs=[
                pl.BlockSpec((tile_b, D_in), lambda i: (i, 0)),   # x (streamed)
                pl.BlockSpec((D_in, H1p),    lambda i: (0, 0)),   # W1 (resident)
                pl.BlockSpec((1, H1p),       lambda i: (0, 0)),   # b1
                pl.BlockSpec((H1p, H2p),     lambda i: (0, 0)),   # W2 (resident)
                pl.BlockSpec((1, H2p),       lambda i: (0, 0)),   # b2
            ],
            out_specs=pl.BlockSpec((tile_b, H2p), lambda i: (i, 0)),
        ),
        compiler_params=pltpu.CompilerParams(
            dimension_semantics=("parallel",),
            vmem_limit_bytes=_VMEM_LIMIT_BYTES,
        ),
    )(xc, w1p, b1p, w2p, b2p)

    # Slice the real output columns back out (lane-dense store inside kernel).
    return out_padded[:, :H2]


def init_dnn_params(key, input_dim, hidden_layers=(64, 32), dtype=jnp.float32):
    """Deterministic init matching nn.Linear's default U(-1/sqrt(fan_in), +)."""
    params = []
    current = input_dim
    for h in hidden_layers:
        key, kw, kb = jax.random.split(key, 3)
        bound = 1.0 / math.sqrt(current)
        # stored as [in, out] (transposed from PyTorch [out, in])
        w = jax.random.uniform(kw, (current, h), dtype, -bound, bound)
        b = jax.random.uniform(kb, (1, h), dtype, -bound, bound)
        params.append((w, b))
        current = h
    return params


def dnn_reference(x, params):
    h = x
    for w, b in params:
        h = jnp.maximum(h @ w + b, 0.0)
    return h


if __name__ == "__main__":
    key = jax.random.PRNGKey(0)
    batch, input_dim = 512, 32          # multi-tile grid (tile_b = 256 -> 2 steps)
    hidden_layers = (64, 32)

    key, kx = jax.random.split(key)
    x = jax.random.normal(kx, (batch, input_dim), jnp.float32)

    (w1, b1), (w2, b2) = init_dnn_params(key, input_dim, hidden_layers)

    out = dnn_forward(x, w1, b1, w2, b2)
    out = jax.block_until_ready(out)

    ref = dnn_reference(x, [(w1, b1), (w2, b2)])
    assert out.shape == (batch, hidden_layers[-1])
    # bf16 compute path vs f32 reference -> loose-but-safe tolerance.
    assert jnp.allclose(out, ref, atol=2e-2, rtol=2e-2), "mismatch vs reference"

    print("KERNEL_OK")
</pallas_src>

<mosaic_0001>
module attributes {stable_mosaic.version = 11 : i64} {
  func.func @_dnn_kernel(%arg0: i32, %arg1: memref<256x32xbf16, #tpu.memory_space<vmem>>, %arg2: memref<32x128xbf16, #tpu.memory_space<vmem>>, %arg3: memref<1x128xbf16, #tpu.memory_space<vmem>>, %arg4: memref<128x128xbf16, #tpu.memory_space<vmem>>, %arg5: memref<1x128xbf16, #tpu.memory_space<vmem>>, %arg6: memref<256x128xf32, #tpu.memory_space<vmem>>) attributes {dimension_semantics = [#tpu.dimension_semantics<parallel>], iteration_bounds = array<i64: 2>, scalar_prefetch = 0 : i64, scratch_operands = 0 : i64, tpu.core_type = #tpu.core_type<tc>, window_params = [{transform_indices = @transform_0, window_bounds = array<i64: 256, 32>}, {pipeline_mode = #tpu.pipeline_mode<synchronous>, transform_indices = @transform_1, window_bounds = array<i64: 32, 128>}, {pipeline_mode = #tpu.pipeline_mode<synchronous>, transform_indices = @transform_2, window_bounds = array<i64: 1, 128>}, {pipeline_mode = #tpu.pipeline_mode<synchronous>, transform_indices = @transform_3, window_bounds = array<i64: 128, 128>}, {pipeline_mode = #tpu.pipeline_mode<synchronous>, transform_indices = @transform_4, window_bounds = array<i64: 1, 128>}, {transform_indices = @transform_5, window_bounds = array<i64: 256, 128>}]} {
    %c0 = arith.constant 0 : index
    %c0_0 = arith.constant 0 : index
    %0 = vector.load %arg1[%c0, %c0_0] : memref<256x32xbf16, #tpu.memory_space<vmem>>, vector<256x32xbf16>
    %c0_1 = arith.constant 0 : index
    %c0_2 = arith.constant 0 : index
    %1 = vector.load %arg2[%c0_1, %c0_2] : memref<32x128xbf16, #tpu.memory_space<vmem>>, vector<32x128xbf16>
    %cst = arith.constant dense<0.000000e+00> : vector<256x128xf32>
    %2 = tpu.matmul %0, %1, %cst {dimension_numbers = #tpu.dot_dimension_numbers<[1], [0], [0], [1], [0, 0, 1, 1], [], []>} : vector<256x32xbf16>, vector<32x128xbf16>, vector<256x128xf32> -> vector<256x128xf32>
    %c0_3 = arith.constant 0 : index
    %c0_4 = arith.constant 0 : index
    %3 = vector.load %arg3[%c0_3, %c0_4] : memref<1x128xbf16, #tpu.memory_space<vmem>>, vector<1x128xbf16>
    %4 = arith.extf %3 : vector<1x128xbf16> to vector<1x128xf32>
    %5 = vector.broadcast %4 : vector<1x128xf32> to vector<256x128xf32>
    %6 = arith.addf %2, %5 : vector<256x128xf32>
    %cst_5 = arith.constant 0.000000e+00 : f32
    %7 = vector.broadcast %cst_5 : f32 to vector<256x128xf32>
    %8 = arith.maximumf %6, %7 : vector<256x128xf32>
    %9 = arith.truncf %8 : vector<256x128xf32> to vector<256x128xbf16>
    %c0_6 = arith.constant 0 : index
    %c0_7 = arith.constant 0 : index
    %10 = vector.load %arg4[%c0_6, %c0_7] : memref<128x128xbf16, #tpu.memory_space<vmem>>, vector<128x128xbf16>
    %cst_8 = arith.constant dense<0.000000e+00> : vector<256x128xf32>
    %11 = tpu.matmul %9, %10, %cst_8 {dimension_numbers = #tpu.dot_dimension_numbers<[1], [0], [0], [1], [0, 0, 1, 1], [], []>} : vector<256x128xbf16>, vector<128x128xbf16>, vector<256x128xf32> -> vector<256x128xf32>
    %c0_9 = arith.constant 0 : index
    %c0_10 = arith.constant 0 : index
    %12 = vector.load %arg5[%c0_9, %c0_10] : memref<1x128xbf16, #tpu.memory_space<vmem>>, vector<1x128xbf16>
    %13 = arith.extf %12 : vector<1x128xbf16> to vector<1x128xf32>
    %14 = vector.broadcast %13 : vector<1x128xf32> to vector<256x128xf32>
    %15 = arith.addf %11, %14 : vector<256x128xf32>
    %cst_11 = arith.constant 0.000000e+00 : f32
    %16 = vector.broadcast %cst_11 : f32 to vector<256x128xf32>
    %17 = arith.maximumf %15, %16 : vector<256x128xf32>
    %c0_12 = arith.constant 0 : index
    %c0_13 = arith.constant 0 : index
    %18 = vector.load %arg6[%c0_12, %c0_13] : memref<256x128xf32, #tpu.memory_space<vmem>>, vector<256x128xf32>
    tpu.vector_store %arg6[%c0_12, %c0_13], %17 {strides = array<i32>} : memref<256x128xf32, #tpu.memory_space<vmem>>, vector<256x128xf32>,
    return
  }
  func.func @transform_0(%arg0: i32) -> (i32, i32) {
    %c0_i32 = arith.constant 0 : i32
    %c0_i32_0 = arith.constant 0 : i32
    return %arg0, %c0_i32 : i32, i32
  }
  func.func @transform_1(%arg0: i32) -> (i32, i32) {
    %c0_i32 = arith.constant 0 : i32
    %c0_i32_0 = arith.constant 0 : i32
    %c0_i32_1 = arith.constant 0 : i32
    return %c0_i32, %c0_i32_0 : i32, i32
  }
  func.func @transform_2(%arg0: i32) -> (i32, i32) {
    %c0_i32 = arith.constant 0 : i32
    %c0_i32_0 = arith.constant 0 : i32
    %c0_i32_1 = arith.constant 0 : i32
    return %c0_i32, %c0_i32_0 : i32, i32
  }
  func.func @transform_3(%arg0: i32) -> (i32, i32) {
    %c0_i32 = arith.constant 0 : i32
    %c0_i32_0 = arith.constant 0 : i32
    %c0_i32_1 = arith.constant 0 : i32
    return %c0_i32, %c0_i32_0 : i32, i32
  }
  func.func @transform_4(%arg0: i32) -> (i32, i32) {
    %c0_i32 = arith.constant 0 : i32
    %c0_i32_0 = arith.constant 0 : i32
    %c0_i32_1 = arith.constant 0 : i32
    return %c0_i32, %c0_i32_0 : i32, i32
  }
  func.func @transform_5(%arg0: i32) -> (i32, i32) {
    %c0_i32 = arith.constant 0 : i32
    %c0_i32_0 = arith.constant 0 : i32
    return %arg0, %c0_i32 : i32, i32
  }
}

</mosaic_0001>

<llo_original>
// kernel: tpu_custom_call.1
$region0: #{tpu_custom_call.1}
  #allocation0 [shape = 'u32[]', space=smem, size = 0x4, offset = 0x4, fixed_abs, tag = 'smem constant byte address 0x4 - core index']
  #allocation1 [shape = 'u32[144,128]{1,0:T(1,128)}', space=vmem, size = 0x12000, scoped, tag = 'internal scratch']
  %s0 = inlined_call_operand.vmem [shape: bf16[512,32], index: 0, kind: input, shape index: {}]
  %s1 = inlined_call_operand.vmem [shape: bf16[32,128], index: 1, kind: input, shape index: {}]
  %s2 = inlined_call_operand.vmem [shape: bf16[1,128], index: 2, kind: input, shape index: {}]
  %s3 = inlined_call_operand.vmem [shape: bf16[128,128], index: 3, kind: input, shape index: {}]
  %s4 = inlined_call_operand.vmem [shape: bf16[1,128], index: 4, kind: input, shape index: {}]
  %s5 = inlined_call_operand.hbm [shape: f32[512,128], index: 5, kind: output, shape index: {}]
  %s6 = sld [smem:[#allocation0]]
  $region53: #{tpu_custom_call.1} parent=0
    _
  %s8 = ssub.s32 1, %s6
  %s9 = scalar_select 0, %s8, %s6
  $region1: #{tpu_custom_call.1} parent=0
    #allocation2 [shape = 'u8[262144]{0}', space=vmem, size = 0x40000, scoped, tag = 'output window, operand 0']
    #allocation3 [shape = 's32[2]{0}', space=sflag, size = 0x8, scoped, tag = 'scoped memory for tpu_custom_call.1']
    %10 = vsyncpa [#allocation3], 0
    %s11 = scalar_lea.sflag [#allocation3], 1
    %12 = vsyncpa %s11, 0
    loop: start=0, step=1, limit=4
    $region2: #{tpu_custom_call.1} parent=1 // loop_pre_header
      _
    $region3: #{tpu_custom_call.1} parent=1 // loop_header
      %s14 = sphi 0, %s18
      %p15 = scmp.ge.s32.totalorder %s14, 4
      %s24 = sphi 0, %s26
      %s27 = sphi 0, %s24
      %s28 = sphi 0, %s27
      %s44 = sphi 0, %s28
      %s48 = sphi 0, %s48
      %s50 = sphi 0, %s48
      %s51 = sphi 0, %s50
      %s65 = sphi 0, %s51
      %s69 = sphi 0, %s69
      %s71 = sphi 0, %s69
      %s72 = sphi 0, %s71
      %s86 = sphi 0, %s72
      %s90 = sphi 0, %s90
      %s92 = sphi 0, %s90
      %s93 = sphi 0, %s92
      %s107 = sphi 0, %s93
      %s111 = sphi 0, %s111
      %s113 = sphi 0, %s111
      %s114 = sphi 0, %s113
      %s128 = sphi 0, %s114
      %s134 = sphi 0, %s136
      %s137 = sphi 0, %s134
      %s138 = sphi 0, %s137
      %s154 = sphi 0, %s138
    $region4: #{tpu_custom_call.1} parent=1 // loop_header_branch
      %17 = sbr.rel (%p15) target = $region8
    $region5: #{tpu_custom_call.1} parent=1 // loop_body
      %s19 = ssub.s32 %s14, 1
      %s20 = ssub.s32 %s14, 2
      %s21 = sadd.s32 %s14, 1
      %s22 = ssub.s32 %s14, %s21
      %p23 = scmp.eq.s32.totalorder %s22, 0
      %s25 = sadd.s32 %s24, 1
      %s26 = scalar_select %p23, %s24, %s25
      %p29 = pneg %p23
      %p30 = scmp.eq.s32.totalorder %s14, 1
      %p31 = por %p29, %p30
      %p32 = scmp.ne.s32.totalorder %s24, %s27
      %p33 = scmp.eq.s32.totalorder %s14, 0
      %p34 = por %p32, %p33
      %p35 = scmp.ne.s32.totalorder %s24, %s27
      %p36 = scmp.eq.s32.totalorder %s19, 1
      %p37 = por %p35, %p36
      %p38 = scmp.ne.s32.totalorder %s27, %s28
      %p39 = scmp.eq.s32.totalorder %s19, 0
      %p40 = por %p38, %p39
      %p41 = scmp.ne.s32.totalorder %s27, %s28
      %p42 = scmp.eq.s32.totalorder %s20, 1
      %p43 = por %p41, %p42
      %p45 = scmp.ne.s32.totalorder %s28, %s44
      %p46 = scmp.eq.s32.totalorder %s20, 0
      %p47 = por %p45, %p46
      %s49 = sadd.s32 %s48, 1
      %p52 = scmp.eq.s32.totalorder %s14, 1
      %p53 = scmp.ne.s32.totalorder %s48, %s50
      %p54 = scmp.eq.s32.totalorder %s14, 0
      %p55 = por %p53, %p54
      %p56 = scmp.ne.s32.totalorder %s48, %s50
      %p57 = scmp.eq.s32.totalorder %s19, 1
      %p58 = por %p56, %p57
      %p59 = scmp.ne.s32.totalorder %s50, %s51
      %p60 = scmp.eq.s32.totalorder %s19, 0
      %p61 = por %p59, %p60
      %p62 = scmp.ne.s32.totalorder %s50, %s51
      %p63 = scmp.eq.s32.totalorder %s20, 1
      %p64 = por %p62, %p63
      %p66 = scmp.ne.s32.totalorder %s51, %s65
      %p67 = scmp.eq.s32.totalorder %s20, 0
      %p68 = por %p66, %p67
      %s70 = sadd.s32 %s69, 1
      %p73 = scmp.eq.s32.totalorder %s14, 1
      %p74 = scmp.ne.s32.totalorder %s69, %s71
      %p75 = scmp.eq.s32.totalorder %s14, 0
      %p76 = por %p74, %p75
      %p77 = scmp.ne.s32.totalorder %s69, %s71
      %p78 = scmp.eq.s32.totalorder %s19, 1
      %p79 = por %p77, %p78
      %p80 = scmp.ne.s32.totalorder %s71, %s72
      %p81 = scmp.eq.s32.totalorder %s19, 0
      %p82 = por %p80, %p81
      %p83 = scmp.ne.s32.totalorder %s71, %s72
      %p84 = scmp.eq.s32.totalorder %s20, 1
      %p85 = por %p83, %p84
      %p87 = scmp.ne.s32.totalorder %s72, %s86
      %p88 = scmp.eq.s32.totalorder %s20, 0
      %p89 = por %p87, %p88
      %s91 = sadd.s32 %s90, 1
      %p94 = scmp.eq.s32.totalorder %s14, 1
      %p95 = scmp.ne.s32.totalorder %s90, %s92
      %p96 = scmp.eq.s32.totalorder %s14, 0
      %p97 = por %p95, %p96
      %p98 = scmp.ne.s32.totalorder %s90, %s92
      %p99 = scmp.eq.s32.totalorder %s19, 1
      %p100 = por %p98, %p99
      %p101 = scmp.ne.s32.totalorder %s92, %s93
      %p102 = scmp.eq.s32.totalorder %s19, 0
      %p103 = por %p101, %p102
      %p104 = scmp.ne.s32.totalorder %s92, %s93
      %p105 = scmp.eq.s32.totalorder %s20, 1
      %p106 = por %p104, %p105
      %p108 = scmp.ne.s32.totalorder %s93, %s107
      %p109 = scmp.eq.s32.totalorder %s20, 0
      %p110 = por %p108, %p109
      %s112 = sadd.s32 %s111, 1
      %p115 = scmp.eq.s32.totalorder %s14, 1
      %p116 = scmp.ne.s32.totalorder %s111, %s113
      %p117 = scmp.eq.s32.totalorder %s14, 0
      %p118 = por %p116, %p117
      %p119 = scmp.ne.s32.totalorder %s111, %s113
      %p120 = scmp.eq.s32.totalorder %s19, 1
      %p121 = por %p119, %p120
      %p122 = scmp.ne.s32.totalorder %s113, %s114
      %p123 = scmp.eq.s32.totalorder %s19, 0
      %p124 = por %p122, %p123
      %p125 = scmp.ne.s32.totalorder %s113, %s114
      %p126 = scmp.eq.s32.totalorder %s20, 1
      %p127 = por %p125, %p126
      %p129 = scmp.ne.s32.totalorder %s114, %s128
      %p130 = scmp.eq.s32.totalorder %s20, 0
      %p131 = por %p129, %p130
      %s132 = ssub.s32 %s14, %s21
      %p133 = scmp.eq.s32.totalorder %s132, 0
      %s135 = sadd.s32 %s134, 1
      %s136 = scalar_select %p133, %s134, %s135
      %p139 = pneg %p133
      %p140 = scmp.eq.s32.totalorder %s14, 1
      %p141 = por %p139, %p140
      %p142 = scmp.ne.s32.totalorder %s134, %s137
      %p143 = scmp.eq.s32.totalorder %s14, 0
      %p144 = por %p142, %p143
      %p145 = scmp.ne.s32.totalorder %s134, %s137
      %p146 = scmp.eq.s32.totalorder %s19, 1
      %p147 = por %p145, %p146
      %p148 = scmp.ne.s32.totalorder %s137, %s138
      %p149 = scmp.eq.s32.totalorder %s19, 0
      %p150 = por %p148, %p149
      %p151 = scmp.ne.s32.totalorder %s137, %s138
      %p152 = scmp.eq.s32.totalorder %s20, 1
      %p153 = por %p151, %p152
      %p155 = scmp.ne.s32.totalorder %s138, %s154
      %p156 = scmp.eq.s32.totalorder %s20, 0
      %p157 = por %p155, %p156
      %p158 = scmp.le.s32.totalorder 1, %s14
      %p159 = scmp.lt.s32.totalorder %s14, 3
      %p160 = pnand %p158, %p159
      %p161 = pneg %p160
      // Predicated region
      $region9: #{tpu_custom_call.1} parent=5 // pred_check
        _
      $region10: #{tpu_custom_call.1} parent=5 // pred_check_branch
        %163 = sbr.rel (%p160) target = $region12
      $region11: #{tpu_custom_call.1} parent=5 // pred_region
        %s164 = ssub.s32 %s14, 1
        // Predicated region
        $region13: #{tpu_custom_call.1} parent=11 // pred_check
          %p165 = pneg %p61
        $region14: #{tpu_custom_call.1} parent=11 // pred_check_branch
          %167 = sbr.rel (%p165) target = $region16
        $region15: #{tpu_custom_call.1} parent=11 // pred_region
          _
        $region16: #{tpu_custom_call.1} parent=11 // pred_fallthru
          _
        // Predicated region
        $region17: #{tpu_custom_call.1} parent=11 // pred_check
          %p168 = pneg %p82
        $region18: #{tpu_custom_call.1} parent=11 // pred_check_branch
          %170 = sbr.rel (%p168) target = $region20
        $region19: #{tpu_custom_call.1} parent=11 // pred_region
          _
        $region20: #{tpu_custom_call.1} parent=11 // pred_fallthru
          _
        // Predicated region
        $region21: #{tpu_custom_call.1} parent=11 // pred_check
          %p171 = pneg %p103
        $region22: #{tpu_custom_call.1} parent=11 // pred_check_branch
          %173 = sbr.rel (%p171) target = $region24
        $region23: #{tpu_custom_call.1} parent=11 // pred_region
          _
        $region24: #{tpu_custom_call.1} parent=11 // pred_fallthru
          _
        // Predicated region
        $region25: #{tpu_custom_call.1} parent=11 // pred_check
          %p174 = pneg %p124
        $region26: #{tpu_custom_call.1} parent=11 // pred_check_branch
          %176 = sbr.rel (%p174) target = $region28
        $region27: #{tpu_custom_call.1} parent=11 // pred_region
          _
        $region28: #{tpu_custom_call.1} parent=11 // pred_fallthru
          _
      $region12: #{tpu_custom_call.1} parent=5 // pred_fallthru
        _
      %p177 = scmp.lt.s32.totalorder %s14, 2
      // Predicated region
      $region29: #{tpu_custom_call.1} parent=5 // pred_check
        %p178 = pneg %p177
      $region30: #{tpu_custom_call.1} parent=5 // pred_check_branch
        %180 = sbr.rel (%p178) target = $region32
      $region31: #{tpu_custom_call.1} parent=5 // pred_region
        // Predicated region
        $region33: #{tpu_custom_call.1} parent=31 // pred_check
          %p181 = pneg %p34
        $region34: #{tpu_custom_call.1} parent=31 // pred_check_branch
          %183 = sbr.rel (%p181) target = $region36
        $region35: #{tpu_custom_call.1} parent=31 // pred_region
          %s184 = smul.u32 32, %s14
          %p185 = scmp.lt.s32.totalorder %s184, 63
          %s186 = scalar_select %p185, %s184, 63
          %s187 = smul.addr %s186, 4
          %s188 = scalar_lea.vmem %s0, %s187
          %s189 = smul.u32 32, %s14
        $region36: #{tpu_custom_call.1} parent=31 // pred_fallthru
          _
      $region32: #{tpu_custom_call.1} parent=5 // pred_fallthru
        _
      %p190 = scmp.le.s32.totalorder 1, %s14
      %p191 = scmp.lt.s32.totalorder %s14, 3
      %p192 = pnand %p190, %p191
      %p193 = pneg %p192
      // Predicated region
      $region37: #{tpu_custom_call.1} parent=5 // pred_check
        _
      $region38: #{tpu_custom_call.1} parent=5 // pred_check_branch
        %195 = sbr.rel (%p192) target = $region40
      $region39: #{tpu_custom_call.1} parent=5 // pred_region
        %s196 = ssub.s32 %s14, 1
        %s197 = smul.u32 32, %s19
        %p198 = scmp.lt.s32.totalorder %s197, 63
        %s199 = scalar_select %p198, %s197, 63
        %s200 = smul.addr %s199, 4
        %s201 = scalar_lea.vmem %s0, %s200
        %p202 = pneg %p40
        %p203 = pneg %p37
        %p204 = pneg %p61
        %p205 = pneg %p58
        %p206 = pneg %p82
        %p207 = pneg %p79
        %p208 = pneg %p103
        %p209 = pneg %p100
        %p210 = pneg %p124
        %p211 = pneg %p121
        %p212 = pneg %p150
        %p213 = pneg %p147
        %s214 = sand.u32 %s137, 1
        %s215 = scalar_lea.sflag [#allocation3], %s214
        %s216 = sand.u32 %s137, 1
        %s217 = smul.addr %s216, 256
        %s218 = scalar_lea.vmem [#allocation2], %s217
        %s219 = smul.u32 32, %s19
        %p220 = scmp.lt.s32.totalorder %s219, 63
        %s221 = scalar_select %p220, %s219, 63
        %s222 = smul.addr %s221, 4
        %s223 = scalar_lea.vmem %s0, %s222
        %s224 = smul.u32 32, %s19
        %s225 = smul.u32 32, %s19
        %v227 = vld [vmem:[%s223] sm:$0xf]
        %v228 = vld [vmem:[%s223 + $0x4] sm:$0xf]
        %v229 = vld [vmem:[%s223 + $0x8] sm:$0xf]
        %v230 = vld [vmem:[%s223 + $0xc] sm:$0xf]
        %v231 = vld [vmem:[%s223 + $0x10] sm:$0xf]
        %v232 = vld [vmem:[%s223 + $0x14] sm:$0xf]
        %v233 = vld [vmem:[%s223 + $0x18] sm:$0xf]
        %v234 = vld [vmem:[%s223 + $0x1c] sm:$0xf]
        %v235 = vld [vmem:[%s223 + $0x20] sm:$0xf]
        %v236 = vld [vmem:[%s223 + $0x24] sm:$0xf]
        %v237 = vld [vmem:[%s223 + $0x28] sm:$0xf]
        %v238 = vld [vmem:[%s223 + $0x2c] sm:$0xf]
        %v239 = vld [vmem:[%s223 + $0x30] sm:$0xf]
        %v240 = vld [vmem:[%s223 + $0x34] sm:$0xf]
        %v241 = vld [vmem:[%s223 + $0x38] sm:$0xf]
        %v242 = vld [vmem:[%s223 + $0x3c] sm:$0xf]
        %v243 = vld [vmem:[%s223 + $0x40] sm:$0xf]
        %v244 = vld [vmem:[%s223 + $0x44] sm:$0xf]
        %v245 = vld [vmem:[%s223 + $0x48] sm:$0xf]
        %v246 = vld [vmem:[%s223 + $0x4c] sm:$0xf]
        %v247 = vld [vmem:[%s223 + $0x50] sm:$0xf]
        %v248 = vld [vmem:[%s223 + $0x54] sm:$0xf]
        %v249 = vld [vmem:[%s223 + $0x58] sm:$0xf]
        %v250 = vld [vmem:[%s223 + $0x5c] sm:$0xf]
        %v251 = vld [vmem:[%s223 + $0x60] sm:$0xf]
        %v252 = vld [vmem:[%s223 + $0x64] sm:$0xf]
        %v253 = vld [vmem:[%s223 + $0x68] sm:$0xf]
        %v254 = vld [vmem:[%s223 + $0x6c] sm:$0xf]
        %v255 = vld [vmem:[%s223 + $0x70] sm:$0xf]
        %v256 = vld [vmem:[%s223 + $0x74] sm:$0xf]
        %v257 = vld [vmem:[%s223 + $0x78] sm:$0xf]
        %v258 = vld [vmem:[%s223 + $0x7c] sm:$0xf]
        %v259 = vld [vmem:[%s1] sm:$0xf]
        %v260 = vld [vmem:[%s1 + $0x4] sm:$0xf]
        %v261 = vld [vmem:[%s1 + $0x8] sm:$0xf]
        %v262 = vld [vmem:[%s1 + $0xc] sm:$0xf]
        %v263 = vld [vmem:[%s2] sm:$0x1]
        %v264 = vunpack.c.l.bf16 %v263
        %v265 = vlaneseq
        %v266 = vshrl.u32 %v265, 7
        %v267 = vsub.s32 0, %v266
        %v268 = vrot.slane %v264, %v267
        %v301 = vunpack.c.l.b16 %v227
        %v302 = vunpack.c.l.b16 %v228
        %v303 = vunpack.c.l.b16 %v229
        %v304 = vunpack.c.l.b16 %v230
        %v305 = vunpack.c.l.b16 %v231
        %v306 = vunpack.c.l.b16 %v232
        %v307 = vunpack.c.l.b16 %v233
        %v308 = vunpack.c.l.b16 %v234
        %v309 = vunpack.c.l.b16 %v235
        %v310 = vunpack.c.l.b16 %v236
        %v311 = vunpack.c.l.b16 %v237
        %v312 = vunpack.c.l.b16 %v238
        %v313 = vunpack.c.l.b16 %v239
        %v314 = vunpack.c.l.b16 %v240
        %v315 = vunpack.c.l.b16 %v241
        %v316 = vunpack.c.l.b16 %v242
        %v317 = vunpack.c.l.b16 %v243
        %v318 = vunpack.c.l.b16 %v244
        %v319 = vunpack.c.l.b16 %v245
        %v320 = vunpack.c.l.b16 %v246
        %v321 = vunpack.c.l.b16 %v247
        %v322 = vunpack.c.l.b16 %v248
        %v323 = vunpack.c.l.b16 %v249
        %v324 = vunpack.c.l.b16 %v250
        %v325 = vunpack.c.l.b16 %v251
        %v326 = vunpack.c.l.b16 %v252
        %v327 = vunpack.c.l.b16 %v253
        %v328 = vunpack.c.l.b16 %v254
        %v329 = vunpack.c.l.b16 %v255
        %v330 = vunpack.c.l.b16 %v256
        %v331 = vunpack.c.l.b16 %v257
        %v332 = vunpack.c.l.b16 %v258
        %v333 = vpack.c.b16 %v302, %v301
        %v334 = vpack.c.b16 %v304, %v303
        %v335 = vpack.c.b16 %v306, %v305
        %v336 = vpack.c.b16 %v308, %v307
        %v337 = vpack.c.b16 %v310, %v309
        %v338 = vpack.c.b16 %v312, %v311
        %v339 = vpack.c.b16 %v314, %v313
        %v340 = vpack.c.b16 %v316, %v315
        %v341 = vpack.c.b16 %v318, %v317
        %v342 = vpack.c.b16 %v320, %v319
        %v343 = vpack.c.b16 %v322, %v321
        %v344 = vpack.c.b16 %v324, %v323
        %v345 = vpack.c.b16 %v326, %v325
        %v346 = vpack.c.b16 %v328, %v327
        %v347 = vpack.c.b16 %v330, %v329
        %v348 = vpack.c.b16 %v332, %v331
        %v353 = vunpack.c.l.b16 %v259
        %v354 = vunpack.c.l.b16 %v260
        %v355 = vunpack.c.l.b16 %v261
        %v356 = vunpack.c.l.b16 %v262
        %v357 = vpack.c.b16 %v354, %v353
        %v358 = vpack.c.b16 %v356, %v355
        %vm361 = vcmask 261120
        %v363 = vsel %vm361, %v333, 0
        %v366 = vsel %vm361, %v334, 0
        %v369 = vsel %vm361, %v335, 0
        %v372 = vsel %vm361, %v336, 0
        %v375 = vsel %vm361, %v337, 0
        %v378 = vsel %vm361, %v338, 0
        %v381 = vsel %vm361, %v339, 0
        %v384 = vsel %vm361, %v340, 0
        %v387 = vsel %vm361, %v341, 0
        %v390 = vsel %vm361, %v342, 0
        %v393 = vsel %vm361, %v343, 0
        %v396 = vsel %vm361, %v344, 0
        %v399 = vsel %vm361, %v345, 0
        %v402 = vsel %vm361, %v346, 0
        %v405 = vsel %vm361, %v347, 0
        %v408 = vsel %vm361, %v348, 0
        %410 = vmatprep.subr.bf16.mxu0 0
        %411 = vmatpush1.bf16.msra.mxu0 %v357
        %412 = vmatprep.subr.bf16.mxu0 0
        %413 = vmatpush1.bf16.msra.mxu0 %v358
        %414 = vmatprep.subr.bf16.mxu0 0
        %415 = vmatpush1.bf16.msra.mxu0 0
        %416 = vmatprep.subr.bf16.mxu0 0
        %417 = vmatpush1.bf16.msra.mxu0 0
        %418 = vmatprep.subr.bf16.mxu0 0
        %419 = vmatpush1.bf16.msra.mxu0 0
        %420 = vmatprep.subr.bf16.mxu0 0
        %421 = vmatpush1.bf16.msra.mxu0 0
        %422 = vmatprep.subr.bf16.mxu0 0
        %423 = vmatpush1.bf16.msra.mxu0 0
        %424 = vmatprep.subr.bf16.mxu0 0
        %425 = vmatpush1.bf16.msra.mxu0 0
        %426 = vmatprep.subr.bf16.mxu0 0
        %427 = vmatpush1.bf16.msra.mxu0 0
        %428 = vmatprep.subr.bf16.mxu0 0
        %429 = vmatpush1.bf16.msra.mxu0 0
        %430 = vmatprep.subr.bf16.mxu0 0
        %431 = vmatpush1.bf16.msra.mxu0 0
        %432 = vmatprep.subr.bf16.mxu0 0
        %433 = vmatpush1.bf16.msra.mxu0 0
        %434 = vmatprep.subr.bf16.mxu0 0
        %435 = vmatpush1.bf16.msra.mxu0 0
        %436 = vmatprep.subr.bf16.mxu0 0
        %437 = vmatpush1.bf16.msra.mxu0 0
        %438 = vmatprep.subr.bf16.mxu0 0
        %439 = vmatpush1.bf16.msra.mxu0 0
        %440 = vmatprep.subr.bf16.mxu0 0
        %441 = vmatpush1.bf16.msra.mxu0 0
        %442 = vmatprep.mubr.bf16.mxu0 0
        %443 = vmatmul.mubr.bf16.gmra.mrb[0].mxu0 %v363
        %v444 = vpop.f32.mrb[0].mxu0
        %v445 = vadd.f32 %v268, %v444
        %v446 = vpop.f32.mrb[0].mxu0
        %v447 = vpop.f32.mrb[0].mxu0
        %v448 = vadd.f32 %v268, %v447
        %v449 = vpop.f32.mrb[0].mxu0
        %450 = vmatprep.mubr.bf16.mxu0 0
        %451 = vmatmul.mubr.bf16.gmra.mrb[0].mxu0 %v366
        %v452 = vpop.f32.mrb[0].mxu0
        %v453 = vadd.f32 %v268, %v452
        %v454 = vpop.f32.mrb[0].mxu0
        %v455 = vpop.f32.mrb[0].mxu0
        %v456 = vadd.f32 %v268, %v455
        %v457 = vpop.f32.mrb[0].mxu0
        %458 = vmatprep.mubr.bf16.mxu0 0
        %459 = vmatmul.mubr.bf16.gmra.mrb[0].mxu0 %v369
        %v460 = vpop.f32.mrb[0].mxu0
        %v461 = vadd.f32 %v268, %v460
        %v462 = vpop.f32.mrb[0].mxu0
        %v463 = vpop.f32.mrb[0].mxu0
        %v464 = vadd.f32 %v268, %v463
        %v465 = vpop.f32.mrb[0].mxu0
        %466 = vmatprep.mubr.bf16.mxu0 0
        %467 = vmatmul.mubr.bf16.gmra.mrb[0].mxu0 %v372
        %v468 = vpop.f32.mrb[0].mxu0
        %v469 = vadd.f32 %v268, %v468
        %v470 = vpop.f32.mrb[0].mxu0
        %v471 = vpop.f32.mrb[0].mxu0
        %v472 = vadd.f32 %v268, %v471
        %v473 = vpop.f32.mrb[0].mxu0
        %474 = vmatprep.mubr.bf16.mxu0 0
        %475 = vmatmul.mubr.bf16.gmra.mrb[0].mxu0 %v375
        %v476 = vpop.f32.mrb[0].mxu0
        %v477 = vadd.f32 %v268, %v476
        %v478 = vpop.f32.mrb[0].mxu0
        %v479 = vpop.f32.mrb[0].mxu0
        %v480 = vadd.f32 %v268, %v479
        %v481 = vpop.f32.mrb[0].mxu0
        %482 = vmatprep.mubr.bf16.mxu0 0
        %483 = vmatmul.mubr.bf16.gmra.mrb[0].mxu0 %v378
        %v484 = vpop.f32.mrb[0].mxu0
        %v485 = vadd.f32 %v268, %v484
        %v486 = vpop.f32.mrb[0].mxu0
        %v487 = vpop.f32.mrb[0].mxu0
        %v488 = vadd.f32 %v268, %v487
        %v489 = vpop.f32.mrb[0].mxu0
        %490 = vmatprep.mubr.bf16.mxu0 0
        %491 = vmatmul.mubr.bf16.gmra.mrb[0].mxu0 %v381
        %v492 = vpop.f32.mrb[0].mxu0
        %v493 = vadd.f32 %v268, %v492
        %v494 = vpop.f32.mrb[0].mxu0
        %v495 = vpop.f32.mrb[0].mxu0
        %v496 = vadd.f32 %v268, %v495
        %v497 = vpop.f32.mrb[0].mxu0
        %498 = vmatprep.mubr.bf16.mxu0 0
        %499 = vmatmul.mubr.bf16.gmra.mrb[0].mxu0 %v384
        %v500 = vpop.f32.mrb[0].mxu0
        %v501 = vadd.f32 %v268, %v500
        %v502 = vpop.f32.mrb[0].mxu0
        %v503 = vpop.f32.mrb[0].mxu0
        %v504 = vadd.f32 %v268, %v503
        %v505 = vpop.f32.mrb[0].mxu0
        %506 = vmatprep.mubr.bf16.mxu0 0
        %507 = vmatmul.mubr.bf16.gmra.mrb[0].mxu0 %v387
        %v508 = vpop.f32.mrb[0].mxu0
        %v509 = vadd.f32 %v268, %v508
        %v510 = vpop.f32.mrb[0].mxu0
        %v511 = vpop.f32.mrb[0].mxu0
        %v512 = vadd.f32 %v268, %v511
        %v513 = vpop.f32.mrb[0].mxu0
        %514 = vmatprep.mubr.bf16.mxu0 0
        %515 = vmatmul.mubr.bf16.gmra.mrb[0].mxu0 %v390
        %v516 = vpop.f32.mrb[0].mxu0
        %v517 = vadd.f32 %v268, %v516
        %v518 = vpop.f32.mrb[0].mxu0
        %v519 = vpop.f32.mrb[0].mxu0
        %v520 = vadd.f32 %v268, %v519
        %v521 = vpop.f32.mrb[0].mxu0
        %522 = vmatprep.mubr.bf16.mxu0 0
        %523 = vmatmul.mubr.bf16.gmra.mrb[0].mxu0 %v393
        %v524 = vpop.f32.mrb[0].mxu0
        %v525 = vadd.f32 %v268, %v524
        %v526 = vpop.f32.mrb[0].mxu0
        %v527 = vpop.f32.mrb[0].mxu0
        %v528 = vadd.f32 %v268, %v527
        %v529 = vpop.f32.mrb[0].mxu0
        %530 = vmatprep.mubr.bf16.mxu0 0
        %531 = vmatmul.mubr.bf16.gmra.mrb[0].mxu0 %v396
        %v532 = vpop.f32.mrb[0].mxu0
        %v533 = vadd.f32 %v268, %v532
        %v534 = vpop.f32.mrb[0].mxu0
        %v535 = vpop.f32.mrb[0].mxu0
        %v536 = vadd.f32 %v268, %v535
        %v537 = vpop.f32.mrb[0].mxu0
        %538 = vmatprep.mubr.bf16.mxu0 0
        %539 = vmatmul.mubr.bf16.gmra.mrb[0].mxu0 %v399
        %v540 = vpop.f32.mrb[0].mxu0
        %v541 = vadd.f32 %v268, %v540
        %v542 = vpop.f32.mrb[0].mxu0
        %v543 = vpop.f32.mrb[0].mxu0
        %v544 = vadd.f32 %v268, %v543
        %v545 = vpop.f32.mrb[0].mxu0
        %546 = vmatprep.mubr.bf16.mxu0 0
        %547 = vmatmul.mubr.bf16.gmra.mrb[0].mxu0 %v402
        %v548 = vpop.f32.mrb[0].mxu0
        %v549 = vadd.f32 %v268, %v548
        %v550 = vpop.f32.mrb[0].mxu0
        %v551 = vpop.f32.mrb[0].mxu0
        %v552 = vadd.f32 %v268, %v551
        %v553 = vpop.f32.mrb[0].mxu0
        %554 = vmatprep.mubr.bf16.mxu0 0
        %555 = vmatmul.mubr.bf16.gmra.mrb[0].mxu0 %v405
        %v556 = vpop.f32.mrb[0].mxu0
        %v557 = vadd.f32 %v268, %v556
        %v558 = vpop.f32.mrb[0].mxu0
        %v559 = vpop.f32.mrb[0].mxu0
        %v560 = vadd.f32 %v268, %v559
        %v561 = vpop.f32.mrb[0].mxu0
        %562 = vmatprep.mubr.bf16.mxu0 0
        %563 = vmatmul.mubr.bf16.gmra.mrb[0].mxu0 %v408
        %v564 = vpop.f32.mrb[0].mxu0
        %v565 = vadd.f32 %v268, %v564
        %v566 = vpop.f32.mrb[0].mxu0
        %v567 = vpop.f32.mrb[0].mxu0
        %v568 = vadd.f32 %v268, %v567
        %v569 = vpop.f32.mrb[0].mxu0
        %570 = vdwg.mxu0
        %v571 = vmax.f32 %v445, 0.0
        %v572 = vmax.f32 %v448, 0.0
        %v573 = vmax.f32 %v453, 0.0
        %v574 = vmax.f32 %v456, 0.0
        %v575 = vmax.f32 %v461, 0.0
        %v576 = vmax.f32 %v464, 0.0
        %v577 = vmax.f32 %v469, 0.0
        %v578 = vmax.f32 %v472, 0.0
        %v579 = vmax.f32 %v477, 0.0
        %v580 = vmax.f32 %v480, 0.0
        %v581 = vmax.f32 %v485, 0.0
        %v582 = vmax.f32 %v488, 0.0
        %v583 = vmax.f32 %v493, 0.0
        %v584 = vmax.f32 %v496, 0.0
        %v585 = vmax.f32 %v501, 0.0
        %v586 = vmax.f32 %v504, 0.0
        %v587 = vmax.f32 %v509, 0.0
        %v588 = vmax.f32 %v512, 0.0
        %v589 = vmax.f32 %v517, 0.0
        %v590 = vmax.f32 %v520, 0.0
        %v591 = vmax.f32 %v525, 0.0
        %v592 = vmax.f32 %v528, 0.0
        %v593 = vmax.f32 %v533, 0.0
        %v594 = vmax.f32 %v536, 0.0
        %v595 = vmax.f32 %v541, 0.0
        %v596 = vmax.f32 %v544, 0.0
        %v597 = vmax.f32 %v549, 0.0
        %v598 = vmax.f32 %v552, 0.0
        %v599 = vmax.f32 %v557, 0.0
        %v600 = vmax.f32 %v560, 0.0
        %v601 = vmax.f32 %v565, 0.0
        %v602 = vmax.f32 %v568, 0.0
        %v603 = vpack.c.bf16 %v572, %v571
        %v604 = vpack.c.bf16 %v574, %v573
        %v605 = vpack.c.bf16 %v576, %v575
        %v606 = vpack.c.bf16 %v578, %v577
        %v607 = vpack.c.bf16 %v580, %v579
        %v608 = vpack.c.bf16 %v582, %v581
        %v609 = vpack.c.bf16 %v584, %v583
        %v610 = vpack.c.bf16 %v586, %v585
        %v611 = vpack.c.bf16 %v588, %v587
        %v612 = vpack.c.bf16 %v590, %v589
        %v613 = vpack.c.bf16 %v592, %v591
        %v614 = vpack.c.bf16 %v594, %v593
        %v615 = vpack.c.bf16 %v596, %v595
        %v616 = vpack.c.bf16 %v598, %v597
        %v617 = vpack.c.bf16 %v600, %v599
        %v618 = vpack.c.bf16 %v602, %v601
        %v619 = vld [vmem:[%s3] sm:$0xf]
        %v620 = vld [vmem:[%s3 + $0x4] sm:$0xf]
        %v621 = vld [vmem:[%s3 + $0x8] sm:$0xf]
        %v622 = vld [vmem:[%s3 + $0xc] sm:$0xf]
        %v623 = vld [vmem:[%s3 + $0x10] sm:$0xf]
        %v624 = vld [vmem:[%s3 + $0x14] sm:$0xf]
        %v625 = vld [vmem:[%s3 + $0x18] sm:$0xf]
        %v626 = vld [vmem:[%s3 + $0x1c] sm:$0xf]
        %v627 = vld [vmem:[%s3 + $0x20] sm:$0xf]
        %v628 = vld [vmem:[%s3 + $0x24] sm:$0xf]
        %v629 = vld [vmem:[%s3 + $0x28] sm:$0xf]
        %v630 = vld [vmem:[%s3 + $0x2c] sm:$0xf]
        %v631 = vld [vmem:[%s3 + $0x30] sm:$0xf]
        %v632 = vld [vmem:[%s3 + $0x34] sm:$0xf]
        %v633 = vld [vmem:[%s3 + $0x38] sm:$0xf]
        %v634 = vld [vmem:[%s3 + $0x3c] sm:$0xf]
        %v635 = vld [vmem:[%s4] sm:$0x1]
        %v636 = vunpack.c.l.bf16 %v635
        %v637 = vlaneseq
        %v638 = vshrl.u32 %v637, 7
        %v639 = vsub.s32 0, %v638
        %v640 = vrot.slane %v636, %v639
        %v657 = vunpack.c.l.b16 %v619
        %v658 = vunpack.c.l.b16 %v620
        %v659 = vunpack.c.l.b16 %v621
        %v660 = vunpack.c.l.b16 %v622
        %v661 = vunpack.c.l.b16 %v623
        %v662 = vunpack.c.l.b16 %v624
        %v663 = vunpack.c.l.b16 %v625
        %v664 = vunpack.c.l.b16 %v626
        %v665 = vunpack.c.l.b16 %v627
        %v666 = vunpack.c.l.b16 %v628
        %v667 = vunpack.c.l.b16 %v629
        %v668 = vunpack.c.l.b16 %v630
        %v669 = vunpack.c.l.b16 %v631
        %v670 = vunpack.c.l.b16 %v632
        %v671 = vunpack.c.l.b16 %v633
        %v672 = vunpack.c.l.b16 %v634
        %v673 = vpack.c.b16 %v658, %v657
        %v674 = vpack.c.b16 %v660, %v659
        %v675 = vpack.c.b16 %v662, %v661
        %v676 = vpack.c.b16 %v664, %v663
        %v677 = vpack.c.b16 %v666, %v665
        %v678 = vpack.c.b16 %v668, %v667
        %v679 = vpack.c.b16 %v670, %v669
        %v680 = vpack.c.b16 %v672, %v671
        %689 = vmatprep.subr.bf16.mxu0 0
        %690 = vmatpush1.bf16.msra.mxu0 %v673
        %691 = vmatprep.subr.bf16.mxu0 0
        %692 = vmatpush1.bf16.msra.mxu0 %v674
        %693 = vmatprep.subr.bf16.mxu0 0
        %694 = vmatpush1.bf16.msra.mxu0 %v675
        %695 = vmatprep.subr.bf16.mxu0 0
        %696 = vmatpush1.bf16.msra.mxu0 %v676
        %697 = vmatprep.subr.bf16.mxu0 0
        %698 = vmatpush1.bf16.msra.mxu0 %v677
        %699 = vmatprep.subr.bf16.mxu0 0
        %700 = vmatpush1.bf16.msra.mxu0 %v678
        %701 = vmatprep.subr.bf16.mxu0 0
        %702 = vmatpush1.bf16.msra.mxu0 %v679
        %703 = vmatprep.subr.bf16.mxu0 0
        %704 = vmatpush1.bf16.msra.mxu0 %v680
        %705 = vmatprep.subr.bf16.mxu0 0
        %706 = vmatpush1.bf16.msra.mxu0 0
        %707 = vmatprep.subr.bf16.mxu0 0
        %708 = vmatpush1.bf16.msra.mxu0 0
        %709 = vmatprep.subr.bf16.mxu0 0
        %710 = vmatpush1.bf16.msra.mxu0 0
        %711 = vmatprep.subr.bf16.mxu0 0
        %712 = vmatpush1.bf16.msra.mxu0 0
        %713 = vmatprep.subr.bf16.mxu0 0
        %714 = vmatpush1.bf16.msra.mxu0 0
        %715 = vmatprep.subr.bf16.mxu0 0
        %716 = vmatpush1.bf16.msra.mxu0 0
        %717 = vmatprep.subr.bf16.mxu0 0
        %718 = vmatpush1.bf16.msra.mxu0 0
        %719 = vmatprep.subr.bf16.mxu0 0
        %720 = vmatpush1.bf16.msra.mxu0 0
        %721 = vmatprep.mubr.bf16.mxu0 0
        %722 = vmatmul.mubr.bf16.gmra.mrb[0].mxu0 %v603
        %v723 = vpop.f32.mrb[0].mxu0
        %v724 = vadd.f32 %v640, %v723
        %v725 = vpop.f32.mrb[0].mxu0
        %v726 = vpop.f32.mrb[0].mxu0
        %v727 = vadd.f32 %v640, %v726
        %v728 = vpop.f32.mrb[0].mxu0
        %729 = vmatprep.mubr.bf16.mxu0 0
        %730 = vmatmul.mubr.bf16.gmra.mrb[0].mxu0 %v604
        %v731 = vpop.f32.mrb[0].mxu0
        %v732 = vadd.f32 %v640, %v731
        %v733 = vpop.f32.mrb[0].mxu0
        %v734 = vpop.f32.mrb[0].mxu0
        %v735 = vadd.f32 %v640, %v734
        %v736 = vpop.f32.mrb[0].mxu0
        %737 = vmatprep.mubr.bf16.mxu0 0
        %738 = vmatmul.mubr.bf16.gmra.mrb[0].mxu0 %v605
        %v739 = vpop.f32.mrb[0].mxu0
        %v740 = vadd.f32 %v640, %v739
        %v741 = vpop.f32.mrb[0].mxu0
        %v742 = vpop.f32.mrb[0].mxu0
        %v743 = vadd.f32 %v640, %v742
        %v744 = vpop.f32.mrb[0].mxu0
        %745 = vmatprep.mubr.bf16.mxu0 0
        %746 = vmatmul.mubr.bf16.gmra.mrb[0].mxu0 %v606
        %v747 = vpop.f32.mrb[0].mxu0
        %v748 = vadd.f32 %v640, %v747
        %v749 = vpop.f32.mrb[0].mxu0
        %v750 = vpop.f32.mrb[0].mxu0
        %v751 = vadd.f32 %v640, %v750
        %v752 = vpop.f32.mrb[0].mxu0
        %753 = vmatprep.mubr.bf16.mxu0 0
        %754 = vmatmul.mubr.bf16.gmra.mrb[0].mxu0 %v607
        %v755 = vpop.f32.mrb[0].mxu0
        %v756 = vadd.f32 %v640, %v755
        %v757 = vpop.f32.mrb[0].mxu0
        %v758 = vpop.f32.mrb[0].mxu0
        %v759 = vadd.f32 %v640, %v758
        %v760 = vpop.f32.mrb[0].mxu0
        %761 = vmatprep.mubr.bf16.mxu0 0
        %762 = vmatmul.mubr.bf16.gmra.mrb[0].mxu0 %v608
        %v763 = vpop.f32.mrb[0].mxu0
        %v764 = vadd.f32 %v640, %v763
        %v765 = vpop.f32.mrb[0].mxu0
        %v766 = vpop.f32.mrb[0].mxu0
        %v767 = vadd.f32 %v640, %v766
        %v768 = vpop.f32.mrb[0].mxu0
        %769 = vmatprep.mubr.bf16.mxu0 0
        %770 = vmatmul.mubr.bf16.gmra.mrb[0].mxu0 %v609
        %v771 = vpop.f32.mrb[0].mxu0
        %v772 = vadd.f32 %v640, %v771
        %v773 = vpop.f32.mrb[0].mxu0
        %v774 = vpop.f32.mrb[0].mxu0
        %v775 = vadd.f32 %v640, %v774
        %v776 = vpop.f32.mrb[0].mxu0
        %777 = vmatprep.mubr.bf16.mxu0 0
        %778 = vmatmul.mubr.bf16.gmra.mrb[0].mxu0 %v610
        %v779 = vpop.f32.mrb[0].mxu0
        %v780 = vadd.f32 %v640, %v779
        %v781 = vpop.f32.mrb[0].mxu0
        %v782 = vpop.f32.mrb[0].mxu0
        %v783 = vadd.f32 %v640, %v782
        %v784 = vpop.f32.mrb[0].mxu0
        %785 = vmatprep.mubr.bf16.mxu0 0
        %786 = vmatmul.mubr.bf16.gmra.mrb[0].mxu0 %v611
        %v787 = vpop.f32.mrb[0].mxu0
        %v788 = vadd.f32 %v640, %v787
        %v789 = vpop.f32.mrb[0].mxu0
        %v790 = vpop.f32.mrb[0].mxu0
        %v791 = vadd.f32 %v640, %v790
        %v792 = vpop.f32.mrb[0].mxu0
        %793 = vmatprep.mubr.bf16.mxu0 0
        %794 = vmatmul.mubr.bf16.gmra.mrb[0].mxu0 %v612
        %v795 = vpop.f32.mrb[0].mxu0
        %v796 = vadd.f32 %v640, %v795
        %v797 = vpop.f32.mrb[0].mxu0
        %v798 = vpop.f32.mrb[0].mxu0
        %v799 = vadd.f32 %v640, %v798
        %v800 = vpop.f32.mrb[0].mxu0
        %801 = vmatprep.mubr.bf16.mxu0 0
        %802 = vmatmul.mubr.bf16.gmra.mrb[0].mxu0 %v613
        %v803 = vpop.f32.mrb[0].mxu0
        %v804 = vadd.f32 %v640, %v803
        %v805 = vpop.f32.mrb[0].mxu0
        %v806 = vpop.f32.mrb[0].mxu0
        %v807 = vadd.f32 %v640, %v806
        %v808 = vpop.f32.mrb[0].mxu0
        %809 = vmatprep.mubr.bf16.mxu0 0
        %810 = vmatmul.mubr.bf16.gmra.mrb[0].mxu0 %v614
        %v811 = vpop.f32.mrb[0].mxu0
        %v812 = vadd.f32 %v640, %v811
        %v813 = vpop.f32.mrb[0].mxu0
        %v814 = vpop.f32.mrb[0].mxu0
        %v815 = vadd.f32 %v640, %v814
        %v816 = vpop.f32.mrb[0].mxu0
        %817 = vmatprep.mubr.bf16.mxu0 0
        %818 = vmatmul.mubr.bf16.gmra.mrb[0].mxu0 %v615
        %v819 = vpop.f32.mrb[0].mxu0
        %v820 = vadd.f32 %v640, %v819
        %v821 = vpop.f32.mrb[0].mxu0
        %v822 = vpop.f32.mrb[0].mxu0
        %v823 = vadd.f32 %v640, %v822
        %v824 = vpop.f32.mrb[0].mxu0
        %825 = vmatprep.mubr.bf16.mxu0 0
        %826 = vmatmul.mubr.bf16.gmra.mrb[0].mxu0 %v616
        %v827 = vpop.f32.mrb[0].mxu0
        %v828 = vadd.f32 %v640, %v827
        %v829 = vpop.f32.mrb[0].mxu0
        %v830 = vpop.f32.mrb[0].mxu0
        %v831 = vadd.f32 %v640, %v830
        %v832 = vpop.f32.mrb[0].mxu0
        %833 = vmatprep.mubr.bf16.mxu0 0
        %834 = vmatmul.mubr.bf16.gmra.mrb[0].mxu0 %v617
        %v835 = vpop.f32.mrb[0].mxu0
        %v836 = vadd.f32 %v640, %v835
        %v837 = vpop.f32.mrb[0].mxu0
        %v838 = vpop.f32.mrb[0].mxu0
        %v839 = vadd.f32 %v640, %v838
        %v840 = vpop.f32.mrb[0].mxu0
        %841 = vmatprep.mubr.bf16.mxu0 0
        %842 = vmatmul.mubr.bf16.gmra.mrb[0].mxu0 %v618
        %v843 = vpop.f32.mrb[0].mxu0
        %v844 = vadd.f32 %v640, %v843
        %v845 = vpop.f32.mrb[0].mxu0
        %v846 = vpop.f32.mrb[0].mxu0
        %v847 = vadd.f32 %v640, %v846
        %v848 = vpop.f32.mrb[0].mxu0
        %849 = vdwg.mxu0
        %v850 = vmax.f32 %v724, 0.0
        %v851 = vmax.f32 %v727, 0.0
        %v852 = vmax.f32 %v732, 0.0
        %v853 = vmax.f32 %v735, 0.0
        %v854 = vmax.f32 %v740, 0.0
        %v855 = vmax.f32 %v743, 0.0
        %v856 = vmax.f32 %v748, 0.0
        %v857 = vmax.f32 %v751, 0.0
        %v858 = vmax.f32 %v756, 0.0
        %v859 = vmax.f32 %v759, 0.0
        %v860 = vmax.f32 %v764, 0.0
        %v861 = vmax.f32 %v767, 0.0
        %v862 = vmax.f32 %v772, 0.0
        %v863 = vmax.f32 %v775, 0.0
        %v864 = vmax.f32 %v780, 0.0
        %v865 = vmax.f32 %v783, 0.0
        %v866 = vmax.f32 %v788, 0.0
        %v867 = vmax.f32 %v791, 0.0
        %v868 = vmax.f32 %v796, 0.0
        %v869 = vmax.f32 %v799, 0.0
        %v870 = vmax.f32 %v804, 0.0
        %v871 = vmax.f32 %v807, 0.0
        %v872 = vmax.f32 %v812, 0.0
        %v873 = vmax.f32 %v815, 0.0
        %v874 = vmax.f32 %v820, 0.0
        %v875 = vmax.f32 %v823, 0.0
        %v876 = vmax.f32 %v828, 0.0
        %v877 = vmax.f32 %v831, 0.0
        %v878 = vmax.f32 %v836, 0.0
        %v879 = vmax.f32 %v839, 0.0
        %v880 = vmax.f32 %v844, 0.0
        %v881 = vmax.f32 %v847, 0.0
        %882 = vst [vmem:[%s218] sm:$0xff] %v850
        %883 = vst [vmem:[%s218 + $0x8] sm:$0xff] %v851
        %884 = vst [vmem:[%s218 + $0x10] sm:$0xff] %v852
        %885 = vst [vmem:[%s218 + $0x18] sm:$0xff] %v853
        %886 = vst [vmem:[%s218 + $0x20] sm:$0xff] %v854
        %887 = vst [vmem:[%s218 + $0x28] sm:$0xff] %v855
        %888 = vst [vmem:[%s218 + $0x30] sm:$0xff] %v856
        %889 = vst [vmem:[%s218 + $0x38] sm:$0xff] %v857
        %890 = vst [vmem:[%s218 + $0x40] sm:$0xff] %v858
        %891 = vst [vmem:[%s218 + $0x48] sm:$0xff] %v859
        %892 = vst [vmem:[%s218 + $0x50] sm:$0xff] %v860
        %893 = vst [vmem:[%s218 + $0x58] sm:$0xff] %v861
        %894 = vst [vmem:[%s218 + $0x60] sm:$0xff] %v862
        %895 = vst [vmem:[%s218 + $0x68] sm:$0xff] %v863
        %896 = vst [vmem:[%s218 + $0x70] sm:$0xff] %v864
        %897 = vst [vmem:[%s218 + $0x78] sm:$0xff] %v865
        %898 = vst [vmem:[%s218 + $0x80] sm:$0xff] %v866
        %899 = vst [vmem:[%s218 + $0x88] sm:$0xff] %v867
        %900 = vst [vmem:[%s218 + $0x90] sm:$0xff] %v868
        %901 = vst [vmem:[%s218 + $0x98] sm:$0xff] %v869
        %902 = vst [vmem:[%s218 + $0xa0] sm:$0xff] %v870
        %903 = vst [vmem:[%s218 + $0xa8] sm:$0xff] %v871
        %904 = vst [vmem:[%s218 + $0xb0] sm:$0xff] %v872
        %905 = vst [vmem:[%s218 + $0xb8] sm:$0xff] %v873
        %906 = vst [vmem:[%s218 + $0xc0] sm:$0xff] %v874
        %907 = vst [vmem:[%s218 + $0xc8] sm:$0xff] %v875
        %908 = vst [vmem:[%s218 + $0xd0] sm:$0xff] %v876
        %909 = vst [vmem:[%s218 + $0xd8] sm:$0xff] %v877
        %910 = vst [vmem:[%s218 + $0xe0] sm:$0xff] %v878
        %911 = vst [vmem:[%s218 + $0xe8] sm:$0xff] %v879
        %912 = vst [vmem:[%s218 + $0xf0] sm:$0xff] %v880
        %913 = vst [vmem:[%s218 + $0xf8] sm:$0xff] %v881
        %s914 = sand.u32 %s137, 1
        %s915 = scalar_lea.sflag [#allocation3], %s914
        %s916 = sand.u32 %s137, 1
        %s917 = smul.addr %s916, 256
        %s918 = scalar_lea.vmem [#allocation2], %s917
        // Predicated region
        $region41: #{tpu_custom_call.1} parent=39 // pred_check
          %p919 = pneg %p147
        $region42: #{tpu_custom_call.1} parent=39 // pred_check_branch
          %921 = sbr.rel (%p919) target = $region44
        $region43: #{tpu_custom_call.1} parent=39 // pred_region
          %s922 = smul.u32 32, %s19
          %s924 = ssub.s32 4096, 4096
          %925 = vsyncadd %s915, %s924
          %s926 = smul.addr %s922, 128
          %s927 = scalar_lea.hbm %s5, %s926
          %s928 = sshll.u32 %s918, 4
          %s929 = int_to_ptr.vmem [resolvable:$true] %s928
          %934 = dma.vmem_to_hbm [thread:$0]  %s929, 4096, %s927, %s915, 128, 128, 8
        $region44: #{tpu_custom_call.1} parent=39 // pred_fallthru
          _
      $region40: #{tpu_custom_call.1} parent=5 // pred_fallthru
        _
      %p935 = scmp.le.s32.totalorder 2, %s14
      // Predicated region
      $region45: #{tpu_custom_call.1} parent=5 // pred_check
        %p936 = pneg %p935
      $region46: #{tpu_custom_call.1} parent=5 // pred_check_branch
        %938 = sbr.rel (%p936) target = $region48
      $region47: #{tpu_custom_call.1} parent=5 // pred_region
        %s939 = ssub.s32 %s14, 2
        // Predicated region
        $region49: #{tpu_custom_call.1} parent=47 // pred_check
          %p940 = pneg %p153
        $region50: #{tpu_custom_call.1} parent=47 // pred_check_branch
          %942 = sbr.rel (%p940) target = $region52
        $region51: #{tpu_custom_call.1} parent=47 // pred_region
          %s943 = sand.u32 %s138, 1
          %s944 = scalar_lea.sflag [#allocation3], %s943
          %s945 = sand.u32 %s138, 1
          %s946 = smul.addr %s945, 256
          %s947 = scalar_lea.vmem [#allocation2], %s946
          %948 = dma.done %s944, 4096
        $region52: #{tpu_custom_call.1} parent=47 // pred_fallthru
          _
      $region48: #{tpu_custom_call.1} parent=5 // pred_fallthru
        _
    $region6: #{tpu_custom_call.1} parent=1 // loop_footer
      %s18 = sadd.s32 1, %s14
    $region7: #{tpu_custom_call.1} parent=1 // loop_footer_branch
      %13 = sbr.rel target = $region3
    $region8: #{tpu_custom_call.1} parent=1 // loop_exit
      _
    %949 = vsyncpa [#allocation3], 1
    %s950 = scalar_lea.sflag [#allocation3], 1
    %951 = vsyncpa %s950, 1

</llo_original>
